<compile_context>
chip_gen: v7x
topology: tpu7x:2x2x1
jax: 0.10.0
libtpu: 0.0.40
codegen_flags: <defaults>
</compile_context>

<pallas_src>
import functools
from typing import List, Optional, Sequence, Union

import numpy as np
import jax
import jax.numpy as jnp
from jax.experimental import pallas as pl
from jax.experimental.pallas import tpu as pltpu

_LANE = 128
_MIN_ROWS_FOR_SPLIT = 256   # force >=2 batch tiles above this (v7x: 2 TensorCores)


def _round_up(x: int, m: int) -> int:
    return (x + m - 1) // m * m


def _cdiv(a: int, b: int) -> int:
    return -(-a // b)


def _apply_act(y, act: Optional[str]):
    if act is None:
        return y
    if act == "relu":
        return jnp.maximum(y, 0.0)
    if act == "tanh":
        return jnp.tanh(y)
    if act == "sigmoid":
        return jax.nn.sigmoid(y)
    raise ValueError(f"unsupported activation: {act}")


def _fused_mlp_kernel(*refs, activations: Sequence[Optional[str]], compute_dtype):
    """refs = (x_ref, w0, b0, w1, b1, ..., o_ref); all blocks live in VMEM."""
    x_ref, o_ref = refs[0], refs[-1]
    wb = refs[1:-1]
    n_layers = len(wb) // 2
    h = x_ref[...]
    for l in range(n_layers):                        # static unroll over layers
        w_ref, b_ref = wb[2 * l], wb[2 * l + 1]
        # MXU matmul (bf16 or f32 operands) with f32 accumulation.
        y = jnp.dot(h.astype(compute_dtype), w_ref[...],
                    preferred_element_type=jnp.float32)
        y = y + b_ref[...]                           # (1, D_pad) f32 bias broadcast
        h = _apply_act(y, activations[l])            # f32
    o_ref[...] = h.astype(o_ref.dtype)


def _vmem_capacity_bytes() -> int:
    try:
        return int(pltpu.get_tpu_info().vmem_capacity_bytes)
    except Exception:
        return 64 * 1024 * 1024   # conservative (v7x-sized); safe on all gens


def _layer_weight_bytes(dpads, l, w_itemsize):
    return dpads[l] * dpads[l + 1] * w_itemsize + dpads[l + 1] * 4   # W + f32 bias


def _plan_groups(dpads, w_itemsize, budget, io_itemsize, sublane):
    """Greedily split layers into consecutive groups whose resident weights fit."""
    act_floor = sublane * max(dpads) * (2 * io_itemsize + 2 * 4)
    groups, cur, cur_w = [], [], 0
    for l in range(len(dpads) - 1):
        w_b = _layer_weight_bytes(dpads, l, w_itemsize)
        if cur and cur_w + w_b + act_floor > budget:
            groups.append(cur)
            cur, cur_w = [], 0
        # TODO(synk): a single layer whose weights alone exceed VMEM would need
        # feature-dim tiling; such a layer is kept as its own (oversize) group.
        cur.append(l)
        cur_w += w_b
    groups.append(cur)
    return groups


def _max_tile_rows(dpads_g, w_bytes_g, budget, io_itemsize, sublane, tile_cap):
    """Largest batch tile (rows) that fits: resident weights 1x, streamed I/O 2x."""
    per_row = 2 * (dpads_g[0] + dpads_g[-1]) * io_itemsize + 2 * max(dpads_g) * 4
    avail = budget - w_bytes_g
    mt = avail // per_row if avail > 0 else sublane
    return max(sublane, min(tile_cap, (mt // sublane) * sublane))


def _run_group(x_p, params, dpads, acts, *, tile_b, nb, io_dtype, compute_dtype,
               vmem_limit):
    """One fused pallas_call over a consecutive group of layers."""
    B_pad = x_p.shape[0]
    n_layers = len(acts)
    n_in = 1 + 2 * n_layers
    kernel = functools.partial(_fused_mlp_kernel, activations=tuple(acts),
                               compute_dtype=compute_dtype)
    out_shape = jax.ShapeDtypeStruct((B_pad, dpads[-1]), io_dtype)

    if nb == 1:
        # Single invocation: no degenerate 1-point pipeline, full-array VMEM blocks.
        return pl.pallas_call(
            kernel,
            out_shape=out_shape,
            in_specs=[pl.BlockSpec(memory_space=pltpu.MemorySpace.VMEM)] * n_in,
            out_specs=pl.BlockSpec(memory_space=pltpu.MemorySpace.VMEM),
            compiler_params=pltpu.CompilerParams(vmem_limit_bytes=int(vmem_limit)),
        )(x_p, *params)

    out_spec = pl.BlockSpec((tile_b, dpads[-1]), lambda i: (i, 0))

    # Resident weights/biases never change block index -> single-buffer them
    # (pl.Buffered(1)); fall back to default double-buffering if unsupported.
    for single_buffer in (True, False):
        try:
            extra = {"pipeline_mode": pl.Buffered(1)} if single_buffer else {}
            in_specs = [pl.BlockSpec((tile_b, dpads[0]), lambda i: (i, 0))]
            for l in range(n_layers):
                in_specs.append(pl.BlockSpec((dpads[l], dpads[l + 1]),
                                             lambda i: (0, 0), **extra))
                in_specs.append(pl.BlockSpec((1, dpads[l + 1]),
                                             lambda i: (0, 0), **extra))
            return pl.pallas_call(
                kernel,
                out_shape=out_shape,
                grid=(nb,),
                in_specs=in_specs,
                out_specs=out_spec,
                compiler_params=pltpu.CompilerParams(
                    dimension_semantics=("parallel",),   # batch tiles independent
                    vmem_limit_bytes=int(vmem_limit)),
            )(x_p, *params)
        except Exception:
            if not single_buffer:
                raise
    raise AssertionError("unreachable")


class MLPPallas:
    """JAX/Pallas re-implementation of fastNLP MLP forward (fused kernel)."""

    def __init__(self, size_layer: List[int],
                 activation: Union[str, List[str]] = "relu",
                 output_activation: Optional[str] = None,
                 dropout: float = 0.0,
                 key=None,
                 compute_dtype=jnp.float32):
        assert dropout == 0.0, "only p=0.0 (identity dropout) supported here"
        # TODO(synk): training-mode dropout (p > 0) is not implemented.
        if not isinstance(activation, list):
            activation = [activation] * (len(size_layer) - 2)
        if len(activation) != len(size_layer) - 2:
            raise ValueError(
                f"expected {len(size_layer) - 2} activations, got {len(activation)}")
        self.hidden_active = [a.lower() for a in activation]
        self.output_activation = (
            output_activation.lower() if output_activation is not None else None)
        self.size_layer = list(size_layer)
        self.activations = self.hidden_active + [self.output_activation]

        # nn.Linear default init (f32 master copies, also used by the reference).
        if key is None:
            key = jax.random.PRNGKey(0)
        self.weights, self.biases = [], []
        for i in range(1, len(size_layer)):
            fan_in, fan_out = size_layer[i - 1], size_layer[i]
            key, kw, kb = jax.random.split(key, 3)
            bound = 1.0 / (fan_in ** 0.5)
            self.weights.append(jax.random.uniform(
                kw, (fan_in, fan_out), jnp.float32, -bound, bound))
            self.biases.append(jax.random.uniform(
                kb, (fan_out,), jnp.float32, -bound, bound))

        # ---- One-time Pallas prep (hoisted out of the per-call path). ----
        self.compute_dtype = compute_dtype
        comp_np = np.dtype(compute_dtype)
        self.io_dtype = (np.dtype(jnp.bfloat16)
                         if comp_np == np.dtype(jnp.bfloat16)
                         else np.dtype(jnp.float32))
        self._io_itemsize = self.io_dtype.itemsize
        self._sublane = 8 if self._io_itemsize == 4 else 16   # bf16 packs (16,128)
        w_itemsize = comp_np.itemsize

        vmem_cap = _vmem_capacity_bytes()
        self._budget = vmem_cap * 7 // 16       # tile-picking budget (~44% of VMEM)
        self._vmem_limit = vmem_cap * 7 // 8    # declared scoped-VMEM limit
        self._tile_cap = 2048 if vmem_cap >= (96 << 20) else 512

        dims = list(size_layer)
        dpads = [_round_up(d, _LANE) for d in dims]
        self._dims, self._dpads = dims, dpads

        # Zero-pad weights/biases to lane-dense shapes, cast once to compute dtype.
        # Padded rows of the next layer's weights are zero, so padded hidden
        # columns (act(0) may be nonzero, e.g. sigmoid->0.5) stay inert.
        self._flat = []
        for i, (w, b) in enumerate(zip(self.weights, self.biases)):
            wp = jnp.zeros((dpads[i], dpads[i + 1]), self.compute_dtype)
            wp = wp.at[:dims[i], :dims[i + 1]].set(w.astype(self.compute_dtype))
            bp = jnp.zeros((1, dpads[i + 1]), jnp.float32)
            bp = bp.at[:, :dims[i + 1]].set(b)
            self._flat.append((wp, bp))

        # Split layers into groups whose resident weight set fits the VMEM budget.
        self._groups = _plan_groups(dpads, w_itemsize, self._budget,
                                    self._io_itemsize, self._sublane)
        self._max_tile = min(
            _max_tile_rows(
                dpads[g[0]:g[-1] + 2],
                sum(_layer_weight_bytes(dpads, l, w_itemsize) for l in g),
                self._budget, self._io_itemsize, self._sublane, self._tile_cap)
            for g in self._groups)

    def __call__(self, x: jax.Array, tile_b: Optional[int] = None) -> jax.Array:
        lead = x.shape[:-1]
        D0 = x.shape[-1]
        assert D0 == self._dims[0]
        x2 = x.reshape(-1, D0)
        B = x2.shape[0]
        sub = self._sublane
        B8 = _round_up(max(B, 1), sub)

        if tile_b is not None:
            tb = max(sub, _round_up(min(tile_b, B8), sub))
            nb = _cdiv(B8, tb)
        else:
            nb = _cdiv(B8, self._max_tile)
            if nb == 1 and B8 >= _MIN_ROWS_FOR_SPLIT:
                nb = 2                        # give both v7x TensorCores a tile
            tb = _round_up(_cdiv(B8, nb), sub)
        B_pad = nb * tb

        dpads = self._dpads
        if B_pad == B and dpads[0] == D0 and x2.dtype == self.io_dtype:
            h = x2                            # already lane/sublane aligned: no pad
        else:
            h = jnp.zeros((B_pad, dpads[0]), self.io_dtype)
            h = h.at[:B, :D0].set(x2.astype(self.io_dtype))

        for g in self._groups:
            params = []
            for l in g:
                params.extend(self._flat[l])
            h = _run_group(
                h, params, dpads[g[0]:g[-1] + 2],
                [self.activations[l] for l in g],
                tile_b=tb, nb=nb, io_dtype=self.io_dtype,
                compute_dtype=self.compute_dtype, vmem_limit=self._vmem_limit)

        y = h[:B, :self._dims[-1]].astype(x.dtype)
        return y.reshape(*lead, self._dims[-1])


def _reference_forward(mlp: MLPPallas, x: jax.Array) -> jax.Array:
    acts = {"relu": jax.nn.relu, "tanh": jnp.tanh, "sigmoid": jax.nn.sigmoid}
    h = x.astype(jnp.float32)
    for w, b, a in zip(mlp.weights, mlp.biases, mlp.activations):
        h = h @ w + b
        if a is not None:
            h = acts[a](h)
    return h


if __name__ == "__main__":
    key = jax.random.PRNGKey(0)
    kx1, kx2, kx3, kp1, kp2, kp3 = jax.random.split(key, 6)

    # 1) f32, small batch: single-block (no-grid) path, exact match at 1e-5.
    mlp1 = MLPPallas([32, 64, 48, 16], activation="relu",
                     output_activation="tanh", dropout=0.0, key=kp1)
    x1 = jax.random.normal(kx1, (8, 32), jnp.float32)
    y1 = mlp1(x1)
    jax.block_until_ready(y1)
    assert y1.shape == (8, 16)
    y1_ref = _reference_forward(mlp1, x1)
    assert jnp.allclose(y1, y1_ref, atol=1e-5, rtol=1e-5), "mismatch vs reference (1)"

    # 2) f32, batch-tiled grid path (2 "parallel" tiles, resident single-buffered
    #    weights), per-layer activation list.
    mlp2 = MLPPallas([32, 48, 40, 16], activation=["tanh", "relu"],
                     output_activation="sigmoid", dropout=0.0, key=kp2)
    x2 = jax.random.normal(kx2, (128, 32), jnp.float32)
    y2 = mlp2(x2, tile_b=64)
    jax.block_until_ready(y2)
    assert y2.shape == (128, 16)
    y2_ref = _reference_forward(mlp2, x2)
    assert jnp.allclose(y2, y2_ref, atol=1e-5, rtol=1e-5), "mismatch vs reference (2)"

    # 3) bf16 MXU operands + bf16 activation I/O; batch large enough that the
    #    tiler forces >= 2 batch tiles (both v7x TensorCores busy).
    mlp3 = MLPPallas([64, 128, 96, 32], activation="relu",
                     output_activation="tanh", dropout=0.0, key=kp3,
                     compute_dtype=jnp.bfloat16)
    x3 = jax.random.normal(kx3, (384, 64), jnp.float32)
    y3 = mlp3(x3)
    jax.block_until_ready(y3)
    assert y3.shape == (384, 32)
    y3_ref = _reference_forward(mlp3, x3)
    assert jnp.allclose(y3.astype(jnp.float32), y3_ref, atol=3e-2, rtol=3e-2), \
        "mismatch vs reference (3, bf16 tolerance)"

    print("KERNEL_OK")
</pallas_src>

<mosaic_0001>
module attributes {stable_mosaic.version = 11 : i64} {
  func.func @_fused_mlp_kernel(%arg0: memref<8x128xf32, #tpu.memory_space<vmem>>, %arg1: memref<128x128xf32, #tpu.memory_space<vmem>>, %arg2: memref<1x128xf32, #tpu.memory_space<vmem>>, %arg3: memref<128x128xf32, #tpu.memory_space<vmem>>, %arg4: memref<1x128xf32, #tpu.memory_space<vmem>>, %arg5: memref<128x128xf32, #tpu.memory_space<vmem>>, %arg6: memref<1x128xf32, #tpu.memory_space<vmem>>, %arg7: memref<8x128xf32, #tpu.memory_space<vmem>>) attributes {dimension_semantics = [], scalar_prefetch = 0 : i64, scratch_operands = 0 : i64, tpu.core_type = #tpu.core_type<tc>} {
    %c0 = arith.constant 0 : index
    %c0_0 = arith.constant 0 : index
    %0 = vector.load %arg0[%c0, %c0_0] : memref<8x128xf32, #tpu.memory_space<vmem>>, vector<8x128xf32>
    %c0_1 = arith.constant 0 : index
    %c0_2 = arith.constant 0 : index
    %1 = vector.load %arg1[%c0_1, %c0_2] : memref<128x128xf32, #tpu.memory_space<vmem>>, vector<128x128xf32>
    %cst = arith.constant dense<0.000000e+00> : vector<8x128xf32>
    %2 = tpu.matmul %0, %1, %cst {dimension_numbers = #tpu.dot_dimension_numbers<[1], [0], [0], [1], [0, 0, 1, 1], [], []>} : vector<8x128xf32>, vector<128x128xf32>, vector<8x128xf32> -> vector<8x128xf32>
    %c0_3 = arith.constant 0 : index
    %c0_4 = arith.constant 0 : index
    %3 = vector.load %arg2[%c0_3, %c0_4] : memref<1x128xf32, #tpu.memory_space<vmem>>, vector<1x128xf32>
    %4 = vector.broadcast %3 : vector<1x128xf32> to vector<8x128xf32>
    %5 = arith.addf %2, %4 : vector<8x128xf32>
    %cst_5 = arith.constant 0.000000e+00 : f32
    %6 = vector.broadcast %cst_5 : f32 to vector<8x128xf32>
    %7 = arith.maximumf %5, %6 : vector<8x128xf32>
    %c0_6 = arith.constant 0 : index
    %c0_7 = arith.constant 0 : index
    %8 = vector.load %arg3[%c0_6, %c0_7] : memref<128x128xf32, #tpu.memory_space<vmem>>, vector<128x128xf32>
    %cst_8 = arith.constant dense<0.000000e+00> : vector<8x128xf32>
    %9 = tpu.matmul %7, %8, %cst_8 {dimension_numbers = #tpu.dot_dimension_numbers<[1], [0], [0], [1], [0, 0, 1, 1], [], []>} : vector<8x128xf32>, vector<128x128xf32>, vector<8x128xf32> -> vector<8x128xf32>
    %c0_9 = arith.constant 0 : index
    %c0_10 = arith.constant 0 : index
    %10 = vector.load %arg4[%c0_9, %c0_10] : memref<1x128xf32, #tpu.memory_space<vmem>>, vector<1x128xf32>
    %11 = vector.broadcast %10 : vector<1x128xf32> to vector<8x128xf32>
    %12 = arith.addf %9, %11 : vector<8x128xf32>
    %cst_11 = arith.constant 0.000000e+00 : f32
    %13 = vector.broadcast %cst_11 : f32 to vector<8x128xf32>
    %14 = arith.maximumf %12, %13 : vector<8x128xf32>
    %c0_12 = arith.constant 0 : index
    %c0_13 = arith.constant 0 : index
    %15 = vector.load %arg5[%c0_12, %c0_13] : memref<128x128xf32, #tpu.memory_space<vmem>>, vector<128x128xf32>
    %cst_14 = arith.constant dense<0.000000e+00> : vector<8x128xf32>
    %16 = tpu.matmul %14, %15, %cst_14 {dimension_numbers = #tpu.dot_dimension_numbers<[1], [0], [0], [1], [0, 0, 1, 1], [], []>} : vector<8x128xf32>, vector<128x128xf32>, vector<8x128xf32> -> vector<8x128xf32>
    %c0_15 = arith.constant 0 : index
    %c0_16 = arith.constant 0 : index
    %17 = vector.load %arg6[%c0_15, %c0_16] : memref<1x128xf32, #tpu.memory_space<vmem>>, vector<1x128xf32>
    %18 = vector.broadcast %17 : vector<1x128xf32> to vector<8x128xf32>
    %19 = arith.addf %16, %18 : vector<8x128xf32>
    %20 = math.tanh %19 : vector<8x128xf32>
    %c0_17 = arith.constant 0 : index
    %c0_18 = arith.constant 0 : index
    %21 = vector.load %arg7[%c0_17, %c0_18] : memref<8x128xf32, #tpu.memory_space<vmem>>, vector<8x128xf32>
    tpu.vector_store %arg7[%c0_17, %c0_18], %20 {strides = array<i32>} : memref<8x128xf32, #tpu.memory_space<vmem>>, vector<8x128xf32>,
    return
  }
}

</mosaic_0001>

<llo_original>
// kernel: tpu_custom_call.1
$region0: #{tpu_custom_call.1}
  #allocation0 [shape = 'u32[]', space=smem, size = 0x4, offset = 0x4, fixed_abs, tag = 'smem constant byte address 0x4 - core index']
  #allocation1 [shape = 'u32[144,128]{1,0:T(1,128)}', space=vmem, size = 0x12000, scoped, tag = 'internal scratch']
  %s0 = inlined_call_operand.hbm [shape: f32[8,128], index: 0, kind: input, shape index: {}]
  %s1 = inlined_call_operand.hbm [shape: f32[128,128], index: 1, kind: input, shape index: {}]
  %s2 = inlined_call_operand.vmem [shape: f32[1,128], index: 2, kind: input, shape index: {}]
  %s3 = inlined_call_operand.hbm [shape: f32[128,128], index: 3, kind: input, shape index: {}]
  %s4 = inlined_call_operand.vmem [shape: f32[1,128], index: 4, kind: input, shape index: {}]
  %s5 = inlined_call_operand.hbm [shape: f32[128,128], index: 5, kind: input, shape index: {}]
  %s6 = inlined_call_operand.vmem [shape: f32[1,128], index: 6, kind: input, shape index: {}]
  %s7 = inlined_call_operand.hbm [shape: f32[8,128], index: 7, kind: output, shape index: {}]
  %s8 = sld [smem:[#allocation0]]
  $region54: #{tpu_custom_call.1} parent=0
    _
  %s10 = ssub.s32 1, %s8
  %s11 = scalar_select 0, %s10, %s8
  $region1: #{tpu_custom_call.1} parent=0
    #allocation2 [shape = 'u8[4096]{0}', space=vmem, size = 0x1000, scoped, tag = 'input window, operand 0, single buffered']
    #allocation3 [shape = 's32[1]{0}', space=sflag, size = 0x4, scoped, tag = 'scoped memory for tpu_custom_call.1']
    #allocation4 [shape = 's32[1]{0}', space=sflag, size = 0x4, scoped, tag = 'scoped memory for tpu_custom_call.1']
    #allocation5 [shape = 'u8[65536]{0}', space=vmem, size = 0x10000, scoped, tag = 'input window, operand 1, single buffered']
    #allocation6 [shape = 's32[1]{0}', space=sflag, size = 0x4, scoped, tag = 'scoped memory for tpu_custom_call.1']
    #allocation7 [shape = 'u8[65536]{0}', space=vmem, size = 0x10000, scoped, tag = 'input window, operand 3, single buffered']
    #allocation8 [shape = 'u8[65536]{0}', space=vmem, size = 0x10000, scoped, tag = 'input window, operand 5, single buffered']
    #allocation9 [shape = 's32[1]{0}', space=sflag, size = 0x4, scoped, tag = 'scoped memory for tpu_custom_call.1']
    #allocation10 [shape = 'u8[4096]{0}', space=vmem, size = 0x1000, scoped, tag = 'output window, operand 0, single buffered']
    %12 = vsyncpa [#allocation3], 0
    %13 = vsyncpa [#allocation6], 0
    %14 = vsyncpa [#allocation9], 0
    %15 = vsyncpa [#allocation4], 0
    // Predicated region
    $region2: #{tpu_custom_call.1} parent=1 // pred_check
      _
    $region3: #{tpu_custom_call.1} parent=1 // pred_check_branch
      %17 = sbr.rel (0) target = $region5
    $region4: #{tpu_custom_call.1} parent=1 // pred_region
      %s19 = ssub.s32 128, 128
      %20 = vsyncadd [#allocation3], %s19
      %s22 = sshll.u32 [#allocation2], 4
      %s23 = int_to_ptr.vmem [resolvable:$true] %s22
      %25 = dma.hbm_to_vmem [thread:$0]  %s0, 128, %s23, [#allocation3]
    $region5: #{tpu_custom_call.1} parent=1 // pred_fallthru
      _
    // Predicated region
    $region6: #{tpu_custom_call.1} parent=1 // pred_check
      _
    $region7: #{tpu_custom_call.1} parent=1 // pred_check_branch
      %27 = sbr.rel (0) target = $region9
    $region8: #{tpu_custom_call.1} parent=1 // pred_region
      %s29 = ssub.s32 2048, 2048
      %30 = vsyncadd [#allocation6], %s29
      %s31 = sshll.u32 [#allocation5], 4
      %s32 = int_to_ptr.vmem [resolvable:$true] %s31
      %37 = dma.hbm_to_vmem [thread:$0]  %s1, 2048, %s32, [#allocation6], 128, 128, 8
    $region9: #{tpu_custom_call.1} parent=1 // pred_fallthru
      _
    // Predicated region
    $region10: #{tpu_custom_call.1} parent=1 // pred_check
      _
    $region11: #{tpu_custom_call.1} parent=1 // pred_check_branch
      %39 = sbr.rel (0) target = $region13
    $region12: #{tpu_custom_call.1} parent=1 // pred_region
      _
    $region13: #{tpu_custom_call.1} parent=1 // pred_fallthru
      _
    // Predicated region
    $region14: #{tpu_custom_call.1} parent=1 // pred_check
      _
    $region15: #{tpu_custom_call.1} parent=1 // pred_check_branch
      %41 = sbr.rel (0) target = $region17
    $region16: #{tpu_custom_call.1} parent=1 // pred_region
      %s43 = ssub.s32 2048, 2048
      %44 = vsyncadd [#allocation6], %s43
      %s45 = sshll.u32 [#allocation7], 4
      %s46 = int_to_ptr.vmem [resolvable:$true] %s45
      %51 = dma.hbm_to_vmem [thread:$0]  %s3, 2048, %s46, [#allocation6], 128, 128, 8
    $region17: #{tpu_custom_call.1} parent=1 // pred_fallthru
      _
    // Predicated region
    $region18: #{tpu_custom_call.1} parent=1 // pred_check
      _
    $region19: #{tpu_custom_call.1} parent=1 // pred_check_branch
      %53 = sbr.rel (0) target = $region21
    $region20: #{tpu_custom_call.1} parent=1 // pred_region
      _
    $region21: #{tpu_custom_call.1} parent=1 // pred_fallthru
      _
    // Predicated region
    $region22: #{tpu_custom_call.1} parent=1 // pred_check
      _
    $region23: #{tpu_custom_call.1} parent=1 // pred_check_branch
      %55 = sbr.rel (0) target = $region25
    $region24: #{tpu_custom_call.1} parent=1 // pred_region
      %s57 = ssub.s32 2048, 2048
      %58 = vsyncadd [#allocation9], %s57
      %s59 = sshll.u32 [#allocation8], 4
      %s60 = int_to_ptr.vmem [resolvable:$true] %s59
      %65 = dma.hbm_to_vmem [thread:$0]  %s5, 2048, %s60, [#allocation9], 128, 128, 8
    $region25: #{tpu_custom_call.1} parent=1 // pred_fallthru
      _
    // Predicated region
    $region26: #{tpu_custom_call.1} parent=1 // pred_check
      _
    $region27: #{tpu_custom_call.1} parent=1 // pred_check_branch
      %67 = sbr.rel (0) target = $region29
    $region28: #{tpu_custom_call.1} parent=1 // pred_region
      _
    $region29: #{tpu_custom_call.1} parent=1 // pred_fallthru
      _
    // Predicated region
    $region30: #{tpu_custom_call.1} parent=1 // pred_check
      _
    $region31: #{tpu_custom_call.1} parent=1 // pred_check_branch
      %69 = sbr.rel (0) target = $region33
    $region32: #{tpu_custom_call.1} parent=1 // pred_region
      %70 = dma.done [#allocation3], 128
    $region33: #{tpu_custom_call.1} parent=1 // pred_fallthru
      _
    // Predicated region
    $region34: #{tpu_custom_call.1} parent=1 // pred_check
      _
    $region35: #{tpu_custom_call.1} parent=1 // pred_check_branch
      %72 = sbr.rel (0) target = $region37
    $region36: #{tpu_custom_call.1} parent=1 // pred_region
      %73 = dma.done [#allocation6], 2048
    $region37: #{tpu_custom_call.1} parent=1 // pred_fallthru
      _
    // Predicated region
    $region38: #{tpu_custom_call.1} parent=1 // pred_check
      _
    $region39: #{tpu_custom_call.1} parent=1 // pred_check_branch
      %75 = sbr.rel (0) target = $region41
    $region40: #{tpu_custom_call.1} parent=1 // pred_region
      %76 = dma.done [#allocation6], 2048
    $region41: #{tpu_custom_call.1} parent=1 // pred_fallthru
      _
    // Predicated region
    $region42: #{tpu_custom_call.1} parent=1 // pred_check
      _
    $region43: #{tpu_custom_call.1} parent=1 // pred_check_branch
      %78 = sbr.rel (0) target = $region45
    $region44: #{tpu_custom_call.1} parent=1 // pred_region
      %79 = dma.done [#allocation9], 2048
    $region45: #{tpu_custom_call.1} parent=1 // pred_fallthru
      _
    %v80 = vld [vmem:[#allocation2] sm:$0xff]
    %v81 = vld [vmem:[#allocation5] sm:$0xff]
    %v82 = vld [vmem:[#allocation5 + $0x8] sm:$0xff]
    %v83 = vld [vmem:[#allocation5 + $0x10] sm:$0xff]
    %v84 = vld [vmem:[#allocation5 + $0x18] sm:$0xff]
    %v85 = vld [vmem:[#allocation5 + $0x20] sm:$0xff]
    %v86 = vld [vmem:[#allocation5 + $0x28] sm:$0xff]
    %v87 = vld [vmem:[#allocation5 + $0x30] sm:$0xff]
    %v88 = vld [vmem:[#allocation5 + $0x38] sm:$0xff]
    %v89 = vld [vmem:[#allocation5 + $0x40] sm:$0xff]
    %v90 = vld [vmem:[#allocation5 + $0x48] sm:$0xff]
    %v91 = vld [vmem:[#allocation5 + $0x50] sm:$0xff]
    %v92 = vld [vmem:[#allocation5 + $0x58] sm:$0xff]
    %v93 = vld [vmem:[#allocation5 + $0x60] sm:$0xff]
    %v94 = vld [vmem:[#allocation5 + $0x68] sm:$0xff]
    %v95 = vld [vmem:[#allocation5 + $0x70] sm:$0xff]
    %v96 = vld [vmem:[#allocation5 + $0x78] sm:$0xff]
    %v97 = vld [vmem:[%s2] sm:$0x1]
    %v99 = vlaneseq
    %v100 = vshrl.u32 %v99, 7
    %v101 = vsub.s32 0, %v100
    %v102 = vrot.slane %v97, %v101
    %104 = vmatprep.subr.mxu0 0.0
    %105 = vmatpush1.msra.mxu0 %v81
    %106 = vmatprep.subr.mxu0 0.0
    %107 = vmatpush1.msra.mxu0 %v82
    %108 = vmatprep.subr.mxu0 0.0
    %109 = vmatpush1.msra.mxu0 %v83
    %110 = vmatprep.subr.mxu0 0.0
    %111 = vmatpush1.msra.mxu0 %v84
    %112 = vmatprep.subr.mxu0 0.0
    %113 = vmatpush1.msra.mxu0 %v85
    %114 = vmatprep.subr.mxu0 0.0
    %115 = vmatpush1.msra.mxu0 %v86
    %116 = vmatprep.subr.mxu0 0.0
    %117 = vmatpush1.msra.mxu0 %v87
    %118 = vmatprep.subr.mxu0 0.0
    %119 = vmatpush1.msra.mxu0 %v88
    %120 = vmatprep.subr.mxu0 0.0
    %121 = vmatpush1.msra.mxu0 %v89
    %122 = vmatprep.subr.mxu0 0.0
    %123 = vmatpush1.msra.mxu0 %v90
    %124 = vmatprep.subr.mxu0 0.0
    %125 = vmatpush1.msra.mxu0 %v91
    %126 = vmatprep.subr.mxu0 0.0
    %127 = vmatpush1.msra.mxu0 %v92
    %128 = vmatprep.subr.mxu0 0.0
    %129 = vmatpush1.msra.mxu0 %v93
    %130 = vmatprep.subr.mxu0 0.0
    %131 = vmatpush1.msra.mxu0 %v94
    %132 = vmatprep.subr.mxu0 0.0
    %133 = vmatpush1.msra.mxu0 %v95
    %134 = vmatprep.subr.mxu0 0.0
    %135 = vmatpush1.msra.mxu0 %v96
    %136 = vmatprep.subr.mxu0 0.0
    %137 = vmatpush1.msra.mxu0 0.0
    %138 = vmatprep.subr.mxu0 0.0
    %139 = vmatpush1.msra.mxu0 0.0
    %140 = vmatprep.subr.mxu0 0.0
    %141 = vmatpush1.msra.mxu0 0.0
    %142 = vmatprep.subr.mxu0 0.0
    %143 = vmatpush1.msra.mxu0 0.0
    %144 = vmatprep.subr.mxu0 0.0
    %145 = vmatpush1.msra.mxu0 0.0
    %146 = vmatprep.subr.mxu0 0.0
    %147 = vmatpush1.msra.mxu0 0.0
    %148 = vmatprep.subr.mxu0 0.0
    %149 = vmatpush1.msra.mxu0 0.0
    %150 = vmatprep.subr.mxu0 0.0
    %151 = vmatpush1.msra.mxu0 0.0
    %152 = vmatprep.subr.mxu0 0.0
    %153 = vmatpush1.msra.mxu0 0.0
    %154 = vmatprep.subr.mxu0 0.0
    %155 = vmatpush1.msra.mxu0 0.0
    %156 = vmatprep.subr.mxu0 0.0
    %157 = vmatpush1.msra.mxu0 0.0
    %158 = vmatprep.subr.mxu0 0.0
    %159 = vmatpush1.msra.mxu0 0.0
    %160 = vmatprep.subr.mxu0 0.0
    %161 = vmatpush1.msra.mxu0 0.0
    %162 = vmatprep.subr.mxu0 0.0
    %163 = vmatpush1.msra.mxu0 0.0
    %164 = vmatprep.subr.mxu0 0.0
    %165 = vmatpush1.msra.mxu0 0.0
    %166 = vmatprep.subr.mxu0 0.0
    %167 = vmatpush1.msra.mxu0 0.0
    %168 = vmatprep.mubr.f32.mxu0 0.0
    %169 = vmatmul.mubr.f32.gmra.mrb[0].mxu0 %v80
    %v170 = vpop.f32.mrb[0].mxu0
    %v171 = vadd.f32 %v102, %v170
    %v172 = vpop.f32.mrb[0].mxu0
    %173 = vdwg.mxu0
    %v174 = vmax.f32 %v171, 0.0
    %v175 = vld [vmem:[#allocation7] sm:$0xff]
    %v176 = vld [vmem:[#allocation7 + $0x8] sm:$0xff]
    %v177 = vld [vmem:[#allocation7 + $0x10] sm:$0xff]
    %v178 = vld [vmem:[#allocation7 + $0x18] sm:$0xff]
    %v179 = vld [vmem:[#allocation7 + $0x20] sm:$0xff]
    %v180 = vld [vmem:[#allocation7 + $0x28] sm:$0xff]
    %v181 = vld [vmem:[#allocation7 + $0x30] sm:$0xff]
    %v182 = vld [vmem:[#allocation7 + $0x38] sm:$0xff]
    %v183 = vld [vmem:[#allocation7 + $0x40] sm:$0xff]
    %v184 = vld [vmem:[#allocation7 + $0x48] sm:$0xff]
    %v185 = vld [vmem:[#allocation7 + $0x50] sm:$0xff]
    %v186 = vld [vmem:[#allocation7 + $0x58] sm:$0xff]
    %v187 = vld [vmem:[#allocation7 + $0x60] sm:$0xff]
    %v188 = vld [vmem:[#allocation7 + $0x68] sm:$0xff]
    %v189 = vld [vmem:[#allocation7 + $0x70] sm:$0xff]
    %v190 = vld [vmem:[#allocation7 + $0x78] sm:$0xff]
    %v191 = vld [vmem:[%s4] sm:$0x1]
    %v193 = vlaneseq
    %v194 = vshrl.u32 %v193, 7
    %v195 = vsub.s32 0, %v194
    %v196 = vrot.slane %v191, %v195
    %198 = vmatprep.subr.mxu0 0.0
    %199 = vmatpush1.msra.mxu0 %v175
    %200 = vmatprep.subr.mxu0 0.0
    %201 = vmatpush1.msra.mxu0 %v176
    %202 = vmatprep.subr.mxu0 0.0
    %203 = vmatpush1.msra.mxu0 %v177
    %204 = vmatprep.subr.mxu0 0.0
    %205 = vmatpush1.msra.mxu0 %v178
    %206 = vmatprep.subr.mxu0 0.0
    %207 = vmatpush1.msra.mxu0 %v179
    %208 = vmatprep.subr.mxu0 0.0
    %209 = vmatpush1.msra.mxu0 %v180
    %210 = vmatprep.subr.mxu0 0.0
    %211 = vmatpush1.msra.mxu0 %v181
    %212 = vmatprep.subr.mxu0 0.0
    %213 = vmatpush1.msra.mxu0 %v182
    %214 = vmatprep.subr.mxu0 0.0
    %215 = vmatpush1.msra.mxu0 %v183
    %216 = vmatprep.subr.mxu0 0.0
    %217 = vmatpush1.msra.mxu0 %v184
    %218 = vmatprep.subr.mxu0 0.0
    %219 = vmatpush1.msra.mxu0 %v185
    %220 = vmatprep.subr.mxu0 0.0
    %221 = vmatpush1.msra.mxu0 %v186
    %222 = vmatprep.subr.mxu0 0.0
    %223 = vmatpush1.msra.mxu0 %v187
    %224 = vmatprep.subr.mxu0 0.0
    %225 = vmatpush1.msra.mxu0 %v188
    %226 = vmatprep.subr.mxu0 0.0
    %227 = vmatpush1.msra.mxu0 %v189
    %228 = vmatprep.subr.mxu0 0.0
    %229 = vmatpush1.msra.mxu0 %v190
    %230 = vmatprep.subr.mxu0 0.0
    %231 = vmatpush1.msra.mxu0 0.0
    %232 = vmatprep.subr.mxu0 0.0
    %233 = vmatpush1.msra.mxu0 0.0
    %234 = vmatprep.subr.mxu0 0.0
    %235 = vmatpush1.msra.mxu0 0.0
    %236 = vmatprep.subr.mxu0 0.0
    %237 = vmatpush1.msra.mxu0 0.0
    %238 = vmatprep.subr.mxu0 0.0
    %239 = vmatpush1.msra.mxu0 0.0
    %240 = vmatprep.subr.mxu0 0.0
    %241 = vmatpush1.msra.mxu0 0.0
    %242 = vmatprep.subr.mxu0 0.0
    %243 = vmatpush1.msra.mxu0 0.0
    %244 = vmatprep.subr.mxu0 0.0
    %245 = vmatpush1.msra.mxu0 0.0
    %246 = vmatprep.subr.mxu0 0.0
    %247 = vmatpush1.msra.mxu0 0.0
    %248 = vmatprep.subr.mxu0 0.0
    %249 = vmatpush1.msra.mxu0 0.0
    %250 = vmatprep.subr.mxu0 0.0
    %251 = vmatpush1.msra.mxu0 0.0
    %252 = vmatprep.subr.mxu0 0.0
    %253 = vmatpush1.msra.mxu0 0.0
    %254 = vmatprep.subr.mxu0 0.0
    %255 = vmatpush1.msra.mxu0 0.0
    %256 = vmatprep.subr.mxu0 0.0
    %257 = vmatpush1.msra.mxu0 0.0
    %258 = vmatprep.subr.mxu0 0.0
    %259 = vmatpush1.msra.mxu0 0.0
    %260 = vmatprep.subr.mxu0 0.0
    %261 = vmatpush1.msra.mxu0 0.0
    %262 = vmatprep.mubr.f32.mxu0 0.0
    %263 = vmatmul.mubr.f32.gmra.mrb[0].mxu0 %v174
    %v264 = vpop.f32.mrb[0].mxu0
    %v265 = vadd.f32 %v196, %v264
    %v266 = vpop.f32.mrb[0].mxu0
    %267 = vdwg.mxu0
    %v268 = vmax.f32 %v265, 0.0
    %v269 = vld [vmem:[#allocation8] sm:$0xff]
    %v270 = vld [vmem:[#allocation8 + $0x8] sm:$0xff]
    %v271 = vld [vmem:[#allocation8 + $0x10] sm:$0xff]
    %v272 = vld [vmem:[#allocation8 + $0x18] sm:$0xff]
    %v273 = vld [vmem:[#allocation8 + $0x20] sm:$0xff]
    %v274 = vld [vmem:[#allocation8 + $0x28] sm:$0xff]
    %v275 = vld [vmem:[#allocation8 + $0x30] sm:$0xff]
    %v276 = vld [vmem:[#allocation8 + $0x38] sm:$0xff]
    %v277 = vld [vmem:[#allocation8 + $0x40] sm:$0xff]
    %v278 = vld [vmem:[#allocation8 + $0x48] sm:$0xff]
    %v279 = vld [vmem:[#allocation8 + $0x50] sm:$0xff]
    %v280 = vld [vmem:[#allocation8 + $0x58] sm:$0xff]
    %v281 = vld [vmem:[#allocation8 + $0x60] sm:$0xff]
    %v282 = vld [vmem:[#allocation8 + $0x68] sm:$0xff]
    %v283 = vld [vmem:[#allocation8 + $0x70] sm:$0xff]
    %v284 = vld [vmem:[#allocation8 + $0x78] sm:$0xff]
    %v285 = vld [vmem:[%s6] sm:$0x1]
    %v287 = vlaneseq
    %v288 = vshrl.u32 %v287, 7
    %v289 = vsub.s32 0, %v288
    %v290 = vrot.slane %v285, %v289
    %292 = vmatprep.subr.mxu0 0.0
    %293 = vmatpush1.msra.mxu0 %v269
    %294 = vmatprep.subr.mxu0 0.0
    %295 = vmatpush1.msra.mxu0 %v270
    %296 = vmatprep.subr.mxu0 0.0
    %297 = vmatpush1.msra.mxu0 %v271
    %298 = vmatprep.subr.mxu0 0.0
    %299 = vmatpush1.msra.mxu0 %v272
    %300 = vmatprep.subr.mxu0 0.0
    %301 = vmatpush1.msra.mxu0 %v273
    %302 = vmatprep.subr.mxu0 0.0
    %303 = vmatpush1.msra.mxu0 %v274
    %304 = vmatprep.subr.mxu0 0.0
    %305 = vmatpush1.msra.mxu0 %v275
    %306 = vmatprep.subr.mxu0 0.0
    %307 = vmatpush1.msra.mxu0 %v276
    %308 = vmatprep.subr.mxu0 0.0
    %309 = vmatpush1.msra.mxu0 %v277
    %310 = vmatprep.subr.mxu0 0.0
    %311 = vmatpush1.msra.mxu0 %v278
    %312 = vmatprep.subr.mxu0 0.0
    %313 = vmatpush1.msra.mxu0 %v279
    %314 = vmatprep.subr.mxu0 0.0
    %315 = vmatpush1.msra.mxu0 %v280
    %316 = vmatprep.subr.mxu0 0.0
    %317 = vmatpush1.msra.mxu0 %v281
    %318 = vmatprep.subr.mxu0 0.0
    %319 = vmatpush1.msra.mxu0 %v282
    %320 = vmatprep.subr.mxu0 0.0
    %321 = vmatpush1.msra.mxu0 %v283
    %322 = vmatprep.subr.mxu0 0.0
    %323 = vmatpush1.msra.mxu0 %v284
    %324 = vmatprep.subr.mxu0 0.0
    %325 = vmatpush1.msra.mxu0 0.0
    %326 = vmatprep.subr.mxu0 0.0
    %327 = vmatpush1.msra.mxu0 0.0
    %328 = vmatprep.subr.mxu0 0.0
    %329 = vmatpush1.msra.mxu0 0.0
    %330 = vmatprep.subr.mxu0 0.0
    %331 = vmatpush1.msra.mxu0 0.0
    %332 = vmatprep.subr.mxu0 0.0
    %333 = vmatpush1.msra.mxu0 0.0
    %334 = vmatprep.subr.mxu0 0.0
    %335 = vmatpush1.msra.mxu0 0.0
    %336 = vmatprep.subr.mxu0 0.0
    %337 = vmatpush1.msra.mxu0 0.0
    %338 = vmatprep.subr.mxu0 0.0
    %339 = vmatpush1.msra.mxu0 0.0
    %340 = vmatprep.subr.mxu0 0.0
    %341 = vmatpush1.msra.mxu0 0.0
    %342 = vmatprep.subr.mxu0 0.0
    %343 = vmatpush1.msra.mxu0 0.0
    %344 = vmatprep.subr.mxu0 0.0
    %345 = vmatpush1.msra.mxu0 0.0
    %346 = vmatprep.subr.mxu0 0.0
    %347 = vmatpush1.msra.mxu0 0.0
    %348 = vmatprep.subr.mxu0 0.0
    %349 = vmatpush1.msra.mxu0 0.0
    %350 = vmatprep.subr.mxu0 0.0
    %351 = vmatpush1.msra.mxu0 0.0
    %352 = vmatprep.subr.mxu0 0.0
    %353 = vmatpush1.msra.mxu0 0.0
    %354 = vmatprep.subr.mxu0 0.0
    %355 = vmatpush1.msra.mxu0 0.0
    %356 = vmatprep.mubr.f32.mxu0 0.0
    %357 = vmatmul.mubr.f32.gmra.mrb[0].mxu0 %v268
    %v358 = vpop.f32.mrb[0].mxu0
    %v359 = vadd.f32 %v290, %v358
    %v360 = vpop.f32.mrb[0].mxu0
    %361 = vdwg.mxu0
    %v362 = vtanh.pop %v359
    %363 = vst [vmem:[#allocation10] sm:$0xff] %v362
    // Predicated region
    $region46: #{tpu_custom_call.1} parent=1 // pred_check
      _
    $region47: #{tpu_custom_call.1} parent=1 // pred_check_branch
      %365 = sbr.rel (0) target = $region49
    $region48: #{tpu_custom_call.1} parent=1 // pred_region
      %s367 = ssub.s32 128, 128
      %368 = vsyncadd [#allocation4], %s367
      %s370 = sshll.u32 [#allocation10], 4
      %s371 = int_to_ptr.vmem [resolvable:$true] %s370
      %373 = dma.vmem_to_hbm [thread:$0]  %s371, 128, %s7, [#allocation4]
    $region49: #{tpu_custom_call.1} parent=1 // pred_fallthru
      _
    // Predicated region
    $region50: #{tpu_custom_call.1} parent=1 // pred_check
      _
    $region51: #{tpu_custom_call.1} parent=1 // pred_check_branch
      %375 = sbr.rel (0) target = $region53
    $region52: #{tpu_custom_call.1} parent=1 // pred_region
      %376 = dma.done [#allocation4], 128
    $region53: #{tpu_custom_call.1} parent=1 // pred_fallthru
      _
    %377 = vsyncpa [#allocation3], 1
    %378 = vsyncpa [#allocation6], 1
    %379 = vsyncpa [#allocation9], 1
    %380 = vsyncpa [#allocation4], 1

</llo_original>
